<compile_context>
chip_gen: v7x
topology: tpu7x:2x2x1
jax: 0.10.0
libtpu: 0.0.40
codegen_flags: <defaults>
</compile_context>

<pallas_src>
import math

import jax
import jax.numpy as jnp
from jax.experimental import pallas as pl
from jax.experimental.pallas import tpu as pltpu


def _round_up(n: int, m: int) -> int:
    return ((n + m - 1) // m) * m


def _sublane_multiple(dtype) -> int:
    # Packed-sublane row multiple: 8 for 32-bit, 16 for 16-bit, 32 for 8-bit.
    return {4: 8, 2: 16, 1: 32}.get(jnp.dtype(dtype).itemsize, 8)


def _default_vmem_limit() -> int:
    cap = 64 << 20
    try:
        info = pltpu.get_tpu_info()
        cap = int(getattr(info, "vmem_capacity_bytes", cap))
    except Exception:
        pass
    # Leave headroom for Mosaic internal scratch: ~52 MiB on v7x (64 MiB
    # physical per TC), capped at 100 MiB on the 128 MiB parts (v5e/v6e).
    return max(32 << 20, min(100 << 20, cap - (12 << 20)))


def _factorized_output_kernel(x_ref, u_ref, sv_ref, o_ref):
    # (tm, d_ff) @ (d_ff, kp) -> (tm, kp), f32 accumulation on the MXU.
    xu = jnp.dot(x_ref[...], u_ref[...], preferred_element_type=jnp.float32)
    # (tm, kp) @ (kp, dp) -> (tm, dp); cast xu to the operand dtype so bf16
    # compute keeps the second pass on the native bf16 MXU path.
    out = jnp.dot(xu.astype(sv_ref.dtype), sv_ref[...],
                  preferred_element_type=jnp.float32)
    o_ref[...] = out.astype(o_ref.dtype)


def factorized_bert_output(x, U, S, V, *, tm=1024, compute_dtype=jnp.bfloat16,
                           vmem_limit_bytes=None, x_buffer_count=2):
    """x: (..., d_ff) -> (..., d_model) = ((x @ U) @ S) @ V."""
    *lead, d_ff = x.shape
    k = U.shape[1]
    d_model = V.shape[1]
    out_dtype = x.dtype
    M = math.prod(lead)

    # Fold S into V once per call (tiny k*k*d_model matmul, done in f32).
    SV = jnp.dot(S.astype(jnp.float32), V.astype(jnp.float32))

    cdt = jnp.dtype(compute_dtype) if compute_dtype is not None else jnp.dtype(x.dtype)
    x2d = x.reshape(M, d_ff).astype(cdt)
    U_c = U.astype(cdt)
    SV_c = SV.astype(cdt)

    # Lane-dense (multiple-of-128) padding of the factor and output dims only.
    kp = _round_up(k, 128)
    dp = _round_up(d_model, 128)
    U_p = jnp.pad(U_c, ((0, 0), (0, kp - k))) if kp != k else U_c
    SV_p = (jnp.pad(SV_c, ((0, kp - k), (0, dp - d_model)))
            if (kp != k or dp != d_model) else SV_c)

    # Row tile: packed-sublane multiple of the compute dtype; clamp so the
    # grid has >= 4 steps when M is small (v7x two-TC megacore sharding).
    sub = _sublane_multiple(cdt)
    tm_cap = _round_up(pl.cdiv(M, 4), sub)
    tm_eff = max(sub, min(_round_up(tm, sub), tm_cap))
    grid = (pl.cdiv(M, tm_eff),)

    if vmem_limit_bytes is None:
        vmem_limit_bytes = _default_vmem_limit()

    cost = pl.CostEstimate(
        flops=2 * M * (d_ff * kp + kp * dp),
        transcendentals=0,
        bytes_accessed=(M * d_ff * cdt.itemsize
                        + d_ff * kp * cdt.itemsize
                        + kp * dp * cdt.itemsize
                        + M * dp * jnp.dtype(out_dtype).itemsize),
    )

    x_spec_kwargs = {}
    if x_buffer_count != 2:
        # Optional deeper pipeline on the streaming input (sweepable; only use
        # after confirming VMEM headroom on v7x).
        x_spec_kwargs["pipeline_mode"] = pl.Buffered(x_buffer_count)

    out2d = pl.pallas_call(
        _factorized_output_kernel,
        out_shape=jax.ShapeDtypeStruct((M, dp), out_dtype),
        grid=grid,
        in_specs=[
            # Streaming row tile of activations.
            pl.BlockSpec((tm_eff, d_ff), lambda i: (i, 0), **x_spec_kwargs),
            # Invariant weights: constant index_map keeps them resident.
            pl.BlockSpec((d_ff, kp), lambda i: (0, 0)),
            pl.BlockSpec((kp, dp), lambda i: (0, 0)),
        ],
        out_specs=pl.BlockSpec((tm_eff, dp), lambda i: (i, 0)),
        compiler_params=pltpu.CompilerParams(
            dimension_semantics=("parallel",),
            vmem_limit_bytes=vmem_limit_bytes,
        ),
        cost_estimate=cost,
    )(x2d, U_p, SV_p)

    if dp != d_model:
        out2d = out2d[:, :d_model]
    return out2d.reshape(*lead, d_model).astype(out_dtype)


if __name__ == "__main__":
    # Small shapes consistent with the module.
    batch, seq = 2, 8
    d_ff, d_model, k = 64, 32, 16

    key = jax.random.PRNGKey(0)
    kx, ku, ks, kv = jax.random.split(key, 4)

    x = jax.random.normal(kx, (batch, seq, d_ff), dtype=jnp.float32)
    # Deterministic "randn" parameter init (as in the PyTorch __init__).
    U = jax.random.normal(ku, (d_ff, k), dtype=jnp.float32)
    S = jax.random.normal(ks, (k, k), dtype=jnp.float32)
    V = jax.random.normal(kv, (k, d_model), dtype=jnp.float32)

    ref = ((x @ U) @ S) @ V

    # Default production path: bf16 compute with f32 MXU accumulation.
    out_bf16 = jax.block_until_ready(factorized_bert_output(x, U, S, V))
    assert out_bf16.shape == (batch, seq, d_model)
    assert jnp.allclose(out_bf16, ref, rtol=5e-2, atol=2.0), "bf16 path mismatch"

    # f32 compute path: tight check against the f32 reference.
    out_f32 = jax.block_until_ready(
        factorized_bert_output(x, U, S, V, compute_dtype=jnp.float32))
    assert out_f32.shape == (batch, seq, d_model)
    assert jnp.allclose(out_f32, ref, rtol=1e-4, atol=1e-2), "f32 path mismatch"

    print("KERNEL_OK")
</pallas_src>

<mosaic_0001>
module attributes {stable_mosaic.version = 11 : i64} {
  func.func @_factorized_output_kernel(%arg0: i32, %arg1: memref<16x64xbf16, #tpu.memory_space<vmem>>, %arg2: memref<64x128xbf16, #tpu.memory_space<vmem>>, %arg3: memref<128x128xbf16, #tpu.memory_space<vmem>>, %arg4: memref<16x128xf32, #tpu.memory_space<vmem>>) attributes {dimension_semantics = [#tpu.dimension_semantics<parallel>], iteration_bounds = array<i64: 1>, scalar_prefetch = 0 : i64, scratch_operands = 0 : i64, tpu.core_type = #tpu.core_type<tc>, window_params = [{transform_indices = @transform_0, window_bounds = array<i64: 16, 64>}, {pipeline_mode = #tpu.pipeline_mode<synchronous>, transform_indices = @transform_1, window_bounds = array<i64: 64, 128>}, {pipeline_mode = #tpu.pipeline_mode<synchronous>, transform_indices = @transform_2, window_bounds = array<i64: 128, 128>}, {transform_indices = @transform_3, window_bounds = array<i64: 16, 128>}]} {
    %c0 = arith.constant 0 : index
    %c0_0 = arith.constant 0 : index
    %0 = vector.load %arg1[%c0, %c0_0] : memref<16x64xbf16, #tpu.memory_space<vmem>>, vector<16x64xbf16>
    %c0_1 = arith.constant 0 : index
    %c0_2 = arith.constant 0 : index
    %1 = vector.load %arg2[%c0_1, %c0_2] : memref<64x128xbf16, #tpu.memory_space<vmem>>, vector<64x128xbf16>
    %cst = arith.constant dense<0.000000e+00> : vector<16x128xf32>
    %2 = tpu.matmul %0, %1, %cst {dimension_numbers = #tpu.dot_dimension_numbers<[1], [0], [0], [1], [0, 0, 1, 1], [], []>} : vector<16x64xbf16>, vector<64x128xbf16>, vector<16x128xf32> -> vector<16x128xf32>
    %3 = arith.truncf %2 : vector<16x128xf32> to vector<16x128xbf16>
    %c0_3 = arith.constant 0 : index
    %c0_4 = arith.constant 0 : index
    %4 = vector.load %arg3[%c0_3, %c0_4] : memref<128x128xbf16, #tpu.memory_space<vmem>>, vector<128x128xbf16>
    %cst_5 = arith.constant dense<0.000000e+00> : vector<16x128xf32>
    %5 = tpu.matmul %3, %4, %cst_5 {dimension_numbers = #tpu.dot_dimension_numbers<[1], [0], [0], [1], [0, 0, 1, 1], [], []>} : vector<16x128xbf16>, vector<128x128xbf16>, vector<16x128xf32> -> vector<16x128xf32>
    %c0_6 = arith.constant 0 : index
    %c0_7 = arith.constant 0 : index
    %6 = vector.load %arg4[%c0_6, %c0_7] : memref<16x128xf32, #tpu.memory_space<vmem>>, vector<16x128xf32>
    tpu.vector_store %arg4[%c0_6, %c0_7], %5 {strides = array<i32>} : memref<16x128xf32, #tpu.memory_space<vmem>>, vector<16x128xf32>,
    return
  }
  func.func @transform_0(%arg0: i32) -> (i32, i32) {
    %c0_i32 = arith.constant 0 : i32
    %c0_i32_0 = arith.constant 0 : i32
    return %arg0, %c0_i32 : i32, i32
  }
  func.func @transform_1(%arg0: i32) -> (i32, i32) {
    %c0_i32 = arith.constant 0 : i32
    %c0_i32_0 = arith.constant 0 : i32
    %c0_i32_1 = arith.constant 0 : i32
    return %c0_i32, %c0_i32_0 : i32, i32
  }
  func.func @transform_2(%arg0: i32) -> (i32, i32) {
    %c0_i32 = arith.constant 0 : i32
    %c0_i32_0 = arith.constant 0 : i32
    %c0_i32_1 = arith.constant 0 : i32
    return %c0_i32, %c0_i32_0 : i32, i32
  }
  func.func @transform_3(%arg0: i32) -> (i32, i32) {
    %c0_i32 = arith.constant 0 : i32
    %c0_i32_0 = arith.constant 0 : i32
    return %arg0, %c0_i32 : i32, i32
  }
}

</mosaic_0001>

<llo_original>
// kernel: tpu_custom_call.1
$region0: #{tpu_custom_call.1}
  #allocation0 [shape = 'u32[]', space=smem, size = 0x4, offset = 0x4, fixed_abs, tag = 'smem constant byte address 0x4 - core index']
  #allocation1 [shape = 'u32[144,128]{1,0:T(1,128)}', space=vmem, size = 0x12000, scoped, tag = 'internal scratch']
  %s0 = inlined_call_operand.hbm [shape: bf16[16,64], index: 0, kind: input, shape index: {}]
  %s1 = inlined_call_operand.hbm [shape: bf16[64,128], index: 1, kind: input, shape index: {}]
  %s2 = inlined_call_operand.hbm [shape: bf16[128,128], index: 2, kind: input, shape index: {}]
  %s3 = inlined_call_operand.hbm [shape: f32[16,128], index: 3, kind: output, shape index: {}]
  %s4 = sld [smem:[#allocation0]]
  $region34: #{tpu_custom_call.1} parent=0
    _
  %s6 = ssub.s32 1, %s4
  %s7 = scalar_select 0, %s6, %s4
  $region1: #{tpu_custom_call.1} parent=0
    #allocation2 [shape = 'u8[4096]{0}', space=vmem, size = 0x1000, scoped, tag = 'input window, operand 0, single buffered']
    #allocation3 [shape = 's32[1]{0}', space=sflag, size = 0x4, scoped, tag = 'scoped memory for tpu_custom_call.1']
    #allocation4 [shape = 's32[1]{0}', space=sflag, size = 0x4, scoped, tag = 'scoped memory for tpu_custom_call.1']
    #allocation5 [shape = 'u8[16384]{0}', space=vmem, size = 0x4000, scoped, tag = 'input window, operand 1, single buffered']
    #allocation6 [shape = 's32[1]{0}', space=sflag, size = 0x4, scoped, tag = 'scoped memory for tpu_custom_call.1']
    #allocation7 [shape = 'u8[32768]{0}', space=vmem, size = 0x8000, scoped, tag = 'input window, operand 2, single buffered']
    #allocation8 [shape = 'u8[8192]{0}', space=vmem, size = 0x2000, scoped, tag = 'output window, operand 0, single buffered']
    %8 = vsyncpa [#allocation3], 0
    %9 = vsyncpa [#allocation6], 0
    %10 = vsyncpa [#allocation4], 0
    // Predicated region
    $region2: #{tpu_custom_call.1} parent=1 // pred_check
      _
    $region3: #{tpu_custom_call.1} parent=1 // pred_check_branch
      %12 = sbr.rel (0) target = $region5
    $region4: #{tpu_custom_call.1} parent=1 // pred_region
      %s14 = ssub.s32 128, 128
      %15 = vsyncadd [#allocation3], %s14
      %s16 = sshll.u32 [#allocation2], 4
      %s17 = int_to_ptr.vmem [resolvable:$true] %s16
      %22 = dma.hbm_to_vmem [thread:$0]  %s0, 128, %s17, [#allocation3], 64, 64, 4
    $region5: #{tpu_custom_call.1} parent=1 // pred_fallthru
      _
    // Predicated region
    $region6: #{tpu_custom_call.1} parent=1 // pred_check
      _
    $region7: #{tpu_custom_call.1} parent=1 // pred_check_branch
      %24 = sbr.rel (0) target = $region9
    $region8: #{tpu_custom_call.1} parent=1 // pred_region
      %s26 = ssub.s32 512, 512
      %27 = vsyncadd [#allocation6], %s26
      %s28 = sshll.u32 [#allocation5], 4
      %s29 = int_to_ptr.vmem [resolvable:$true] %s28
      %34 = dma.hbm_to_vmem [thread:$0]  %s1, 512, %s29, [#allocation6], 64, 64, 4
    $region9: #{tpu_custom_call.1} parent=1 // pred_fallthru
      _
    // Predicated region
    $region10: #{tpu_custom_call.1} parent=1 // pred_check
      _
    $region11: #{tpu_custom_call.1} parent=1 // pred_check_branch
      %36 = sbr.rel (0) target = $region13
    $region12: #{tpu_custom_call.1} parent=1 // pred_region
      %s38 = ssub.s32 1024, 1024
      %39 = vsyncadd [#allocation6], %s38
      %s40 = sshll.u32 [#allocation7], 4
      %s41 = int_to_ptr.vmem [resolvable:$true] %s40
      %46 = dma.hbm_to_vmem [thread:$0]  %s2, 1024, %s41, [#allocation6], 64, 64, 4
    $region13: #{tpu_custom_call.1} parent=1 // pred_fallthru
      _
    // Predicated region
    $region14: #{tpu_custom_call.1} parent=1 // pred_check
      _
    $region15: #{tpu_custom_call.1} parent=1 // pred_check_branch
      %48 = sbr.rel (0) target = $region17
    $region16: #{tpu_custom_call.1} parent=1 // pred_region
      %49 = dma.done [#allocation3], 128
    $region17: #{tpu_custom_call.1} parent=1 // pred_fallthru
      _
    // Predicated region
    $region18: #{tpu_custom_call.1} parent=1 // pred_check
      _
    $region19: #{tpu_custom_call.1} parent=1 // pred_check_branch
      %51 = sbr.rel (0) target = $region21
    $region20: #{tpu_custom_call.1} parent=1 // pred_region
      %52 = dma.done [#allocation6], 512
    $region21: #{tpu_custom_call.1} parent=1 // pred_fallthru
      _
    // Predicated region
    $region22: #{tpu_custom_call.1} parent=1 // pred_check
      _
    $region23: #{tpu_custom_call.1} parent=1 // pred_check_branch
      %54 = sbr.rel (0) target = $region25
    $region24: #{tpu_custom_call.1} parent=1 // pred_region
      %55 = dma.done [#allocation6], 1024
    $region25: #{tpu_custom_call.1} parent=1 // pred_fallthru
      _
    %v57 = vld [vmem:[#allocation2] sm:$0xf]
    %v58 = vld [vmem:[#allocation2 + $0x4] sm:$0xf]
    %v59 = vld [vmem:[#allocation5] sm:$0xf]
    %v60 = vld [vmem:[#allocation5 + $0x4] sm:$0xf]
    %v61 = vld [vmem:[#allocation5 + $0x8] sm:$0xf]
    %v62 = vld [vmem:[#allocation5 + $0xc] sm:$0xf]
    %v63 = vld [vmem:[#allocation5 + $0x10] sm:$0xf]
    %v64 = vld [vmem:[#allocation5 + $0x14] sm:$0xf]
    %v65 = vld [vmem:[#allocation5 + $0x18] sm:$0xf]
    %v66 = vld [vmem:[#allocation5 + $0x1c] sm:$0xf]
    %v69 = vunpack.c.l.b16 %v57
    %v70 = vunpack.c.l.b16 %v58
    %v71 = vpack.c.b16 %v70, %v69
    %v80 = vunpack.c.l.b16 %v59
    %v81 = vunpack.c.l.b16 %v60
    %v82 = vunpack.c.l.b16 %v61
    %v83 = vunpack.c.l.b16 %v62
    %v84 = vunpack.c.l.b16 %v63
    %v85 = vunpack.c.l.b16 %v64
    %v86 = vunpack.c.l.b16 %v65
    %v87 = vunpack.c.l.b16 %v66
    %v88 = vpack.c.b16 %v81, %v80
    %v89 = vpack.c.b16 %v83, %v82
    %v90 = vpack.c.b16 %v85, %v84
    %v91 = vpack.c.b16 %v87, %v86
    %vm96 = vcmask 523264
    %v98 = vsel %vm96, %v71, 0
    %100 = vmatprep.subr.bf16.mxu0 0
    %101 = vmatpush1.bf16.msra.mxu0 %v88
    %102 = vmatprep.subr.bf16.mxu0 0
    %103 = vmatpush1.bf16.msra.mxu0 %v89
    %104 = vmatprep.subr.bf16.mxu0 0
    %105 = vmatpush1.bf16.msra.mxu0 %v90
    %106 = vmatprep.subr.bf16.mxu0 0
    %107 = vmatpush1.bf16.msra.mxu0 %v91
    %108 = vmatprep.subr.bf16.mxu0 0
    %109 = vmatpush1.bf16.msra.mxu0 0
    %110 = vmatprep.subr.bf16.mxu0 0
    %111 = vmatpush1.bf16.msra.mxu0 0
    %112 = vmatprep.subr.bf16.mxu0 0
    %113 = vmatpush1.bf16.msra.mxu0 0
    %114 = vmatprep.subr.bf16.mxu0 0
    %115 = vmatpush1.bf16.msra.mxu0 0
    %116 = vmatprep.subr.bf16.mxu0 0
    %117 = vmatpush1.bf16.msra.mxu0 0
    %118 = vmatprep.subr.bf16.mxu0 0
    %119 = vmatpush1.bf16.msra.mxu0 0
    %120 = vmatprep.subr.bf16.mxu0 0
    %121 = vmatpush1.bf16.msra.mxu0 0
    %122 = vmatprep.subr.bf16.mxu0 0
    %123 = vmatpush1.bf16.msra.mxu0 0
    %124 = vmatprep.subr.bf16.mxu0 0
    %125 = vmatpush1.bf16.msra.mxu0 0
    %126 = vmatprep.subr.bf16.mxu0 0
    %127 = vmatpush1.bf16.msra.mxu0 0
    %128 = vmatprep.subr.bf16.mxu0 0
    %129 = vmatpush1.bf16.msra.mxu0 0
    %130 = vmatprep.subr.bf16.mxu0 0
    %131 = vmatpush1.bf16.msra.mxu0 0
    %132 = vmatprep.mubr.bf16.mxu0 0
    %133 = vmatmul.mubr.bf16.gmra.mrb[0].mxu0 %v98
    %v134 = vpop.f32.mrb[0].mxu0
    %v135 = vadd.f32 0.0, %v134
    %v136 = vpop.f32.mrb[0].mxu0
    %v137 = vpop.f32.mrb[0].mxu0
    %v138 = vadd.f32 0.0, %v137
    %v139 = vpop.f32.mrb[0].mxu0
    %140 = vdwg.mxu0
    %v141 = vpack.c.bf16 %v138, %v135
    %v142 = vld [vmem:[#allocation7] sm:$0xf]
    %v143 = vld [vmem:[#allocation7 + $0x4] sm:$0xf]
    %v144 = vld [vmem:[#allocation7 + $0x8] sm:$0xf]
    %v145 = vld [vmem:[#allocation7 + $0xc] sm:$0xf]
    %v146 = vld [vmem:[#allocation7 + $0x10] sm:$0xf]
    %v147 = vld [vmem:[#allocation7 + $0x14] sm:$0xf]
    %v148 = vld [vmem:[#allocation7 + $0x18] sm:$0xf]
    %v149 = vld [vmem:[#allocation7 + $0x1c] sm:$0xf]
    %v150 = vld [vmem:[#allocation7 + $0x20] sm:$0xf]
    %v151 = vld [vmem:[#allocation7 + $0x24] sm:$0xf]
    %v152 = vld [vmem:[#allocation7 + $0x28] sm:$0xf]
    %v153 = vld [vmem:[#allocation7 + $0x2c] sm:$0xf]
    %v154 = vld [vmem:[#allocation7 + $0x30] sm:$0xf]
    %v155 = vld [vmem:[#allocation7 + $0x34] sm:$0xf]
    %v156 = vld [vmem:[#allocation7 + $0x38] sm:$0xf]
    %v157 = vld [vmem:[#allocation7 + $0x3c] sm:$0xf]
    %v174 = vunpack.c.l.b16 %v142
    %v175 = vunpack.c.l.b16 %v143
    %v176 = vunpack.c.l.b16 %v144
    %v177 = vunpack.c.l.b16 %v145
    %v178 = vunpack.c.l.b16 %v146
    %v179 = vunpack.c.l.b16 %v147
    %v180 = vunpack.c.l.b16 %v148
    %v181 = vunpack.c.l.b16 %v149
    %v182 = vunpack.c.l.b16 %v150
    %v183 = vunpack.c.l.b16 %v151
    %v184 = vunpack.c.l.b16 %v152
    %v185 = vunpack.c.l.b16 %v153
    %v186 = vunpack.c.l.b16 %v154
    %v187 = vunpack.c.l.b16 %v155
    %v188 = vunpack.c.l.b16 %v156
    %v189 = vunpack.c.l.b16 %v157
    %v190 = vpack.c.b16 %v175, %v174
    %v191 = vpack.c.b16 %v177, %v176
    %v192 = vpack.c.b16 %v179, %v178
    %v193 = vpack.c.b16 %v181, %v180
    %v194 = vpack.c.b16 %v183, %v182
    %v195 = vpack.c.b16 %v185, %v184
    %v196 = vpack.c.b16 %v187, %v186
    %v197 = vpack.c.b16 %v189, %v188
    %206 = vmatprep.subr.bf16.mxu0 0
    %207 = vmatpush1.bf16.msra.mxu0 %v190
    %208 = vmatprep.subr.bf16.mxu0 0
    %209 = vmatpush1.bf16.msra.mxu0 %v191
    %210 = vmatprep.subr.bf16.mxu0 0
    %211 = vmatpush1.bf16.msra.mxu0 %v192
    %212 = vmatprep.subr.bf16.mxu0 0
    %213 = vmatpush1.bf16.msra.mxu0 %v193
    %214 = vmatprep.subr.bf16.mxu0 0
    %215 = vmatpush1.bf16.msra.mxu0 %v194
    %216 = vmatprep.subr.bf16.mxu0 0
    %217 = vmatpush1.bf16.msra.mxu0 %v195
    %218 = vmatprep.subr.bf16.mxu0 0
    %219 = vmatpush1.bf16.msra.mxu0 %v196
    %220 = vmatprep.subr.bf16.mxu0 0
    %221 = vmatpush1.bf16.msra.mxu0 %v197
    %222 = vmatprep.subr.bf16.mxu0 0
    %223 = vmatpush1.bf16.msra.mxu0 0
    %224 = vmatprep.subr.bf16.mxu0 0
    %225 = vmatpush1.bf16.msra.mxu0 0
    %226 = vmatprep.subr.bf16.mxu0 0
    %227 = vmatpush1.bf16.msra.mxu0 0
    %228 = vmatprep.subr.bf16.mxu0 0
    %229 = vmatpush1.bf16.msra.mxu0 0
    %230 = vmatprep.subr.bf16.mxu0 0
    %231 = vmatpush1.bf16.msra.mxu0 0
    %232 = vmatprep.subr.bf16.mxu0 0
    %233 = vmatpush1.bf16.msra.mxu0 0
    %234 = vmatprep.subr.bf16.mxu0 0
    %235 = vmatpush1.bf16.msra.mxu0 0
    %236 = vmatprep.subr.bf16.mxu0 0
    %237 = vmatpush1.bf16.msra.mxu0 0
    %238 = vmatprep.mubr.bf16.mxu0 0
    %239 = vmatmul.mubr.bf16.gmra.mrb[0].mxu0 %v141
    %v240 = vpop.f32.mrb[0].mxu0
    %v241 = vadd.f32 0.0, %v240
    %v242 = vpop.f32.mrb[0].mxu0
    %v243 = vpop.f32.mrb[0].mxu0
    %v244 = vadd.f32 0.0, %v243
    %v245 = vpop.f32.mrb[0].mxu0
    %246 = vdwg.mxu0
    %247 = vst [vmem:[#allocation8] sm:$0xff] %v241
    %248 = vst [vmem:[#allocation8 + $0x8] sm:$0xff] %v244
    // Predicated region
    $region26: #{tpu_custom_call.1} parent=1 // pred_check
      _
    $region27: #{tpu_custom_call.1} parent=1 // pred_check_branch
      %250 = sbr.rel (0) target = $region29
    $region28: #{tpu_custom_call.1} parent=1 // pred_region
      %s252 = ssub.s32 256, 256
      %253 = vsyncadd [#allocation4], %s252
      %s254 = sshll.u32 [#allocation8], 4
      %s255 = int_to_ptr.vmem [resolvable:$true] %s254
      %260 = dma.vmem_to_hbm [thread:$0]  %s255, 256, %s3, [#allocation4], 128, 128, 8
    $region29: #{tpu_custom_call.1} parent=1 // pred_fallthru
      _
    // Predicated region
    $region30: #{tpu_custom_call.1} parent=1 // pred_check
      _
    $region31: #{tpu_custom_call.1} parent=1 // pred_check_branch
      %262 = sbr.rel (0) target = $region33
    $region32: #{tpu_custom_call.1} parent=1 // pred_region
      %263 = dma.done [#allocation4], 256
    $region33: #{tpu_custom_call.1} parent=1 // pred_fallthru
      _
    %264 = vsyncpa [#allocation3], 1
    %265 = vsyncpa [#allocation6], 1
    %266 = vsyncpa [#allocation4], 1

</llo_original>
